<compile_context>
chip_gen: v5e
topology: v5e:2x2
jax: 0.10.0
libtpu: 0.0.40
codegen_flags: <defaults>
</compile_context>

<pallas_src>
import functools

import jax
import jax.numpy as jnp
from jax.experimental import pallas as pl
from jax.experimental.pallas import tpu as pltpu

_LANE = 128        # lane width: last-dim tiling quantum
_TB_TARGET = 64    # batch-tile rows: >=8 MXU M-rows; B > 64 yields >=2 B-tiles
                   # so the "parallel" axis shards across both v7x TensorCores.


def _round_up(x, m):
    return ((x + m - 1) // m) * m


@functools.lru_cache(maxsize=None)
def _vmem_limit():
    """Scoped-VMEM limit: ~3/4 of physical (96 MiB on v5e/v6e, 48 MiB on v7x)."""
    try:
        cap = int(pltpu.get_tpu_info().vmem_capacity_bytes)
    except Exception:  # query unavailable -> conservative cross-generation value
        cap = 64 * 1024 * 1024
    return min(cap * 3 // 4, 96 * 1024 * 1024)


def _choose_tb(B):
    # Full-extent block for small batches (no padding / no partial blocks);
    # otherwise a sublane-aligned tile; Pallas masks the ragged last B block.
    return B if B <= _TB_TARGET else _TB_TARGET


def _choose_s_tiling(S, tb, H, itemsize, reserved_bytes=0):
    """Pick (ts, Sp): the S-reduction tile and the (rarely padded) S extent.

    The double-buffered token tile (2 * tb * ts * H * itemsize) targets ~40%
    of the scoped-VMEM budget (minus the resident label table in the fused
    kernel).  No padding copy of the activation is made unless S both needs
    multiple tiles and is not a multiple of 128 (atypical for encoders).
    """
    budget = max(4 << 20, int((_vmem_limit() - reserved_bytes) * 0.4))
    cap = max(_LANE, budget // max(1, 2 * tb * H * itemsize))
    if S <= cap:
        return S, S                      # single full-S block, no padding
    Sp = S if S % _LANE == 0 else _round_up(S, _LANE)
    ts = max(_LANE, (min(cap, Sp) // _LANE) * _LANE)
    while ts > _LANE and Sp % ts:
        ts -= _LANE
    return ts, _round_up(Sp, ts)


def _prep_inputs(token_embeddings, attention_mask, Sp):
    B, S, H = token_embeddings.shape
    tok = token_embeddings
    mask = attention_mask.astype(token_embeddings.dtype)
    if Sp != S:
        # Rare fallback: zero-pad the S tail so padded tokens never pollute
        # the masked sum (mask tail is zero).
        tok = jnp.pad(tok, ((0, 0), (0, Sp - S), (0, 0)))
        mask = jnp.pad(mask, ((0, 0), (0, Sp - S)))
    # (B, 1, Sp): TS stays on lanes (dense DMA / dense vregs) and the mask
    # gets an explicit M=1 free dim so pooling is a batched MXU matmul.
    return tok, mask.reshape(B, 1, Sp)


def _label_spec(Lp, H):
    # Constant-index resident table: single-buffer it (a second pipeline
    # buffer is pure VMEM waste); frees headroom for bigger token tiles.
    idx = lambda i, s: (0, 0)
    try:
        return pl.BlockSpec((Lp, H), idx, pipeline_mode=pl.Buffered(1))
    except (TypeError, ValueError):  # older API without pipeline_mode
        return pl.BlockSpec((Lp, H), idx)


# ---------------------------------------------------------------------------
# Kernel 1 (training path): masked mean pooling + L2 normalize.
#   grid = (B tiles "parallel", S tiles "arbitrary" reduction)
#   F.normalize(sum(tok*m)/clamp(sum(m))) == sum(tok*m) / ||sum(tok*m)||,
#   so the mean-pool count cancels and is never computed.
# ---------------------------------------------------------------------------
def _pool_norm_kernel(tok_ref, mask_ref, out_ref, acc_ref):
    s = pl.program_id(1)

    @pl.when(s == 0)
    def _():
        acc_ref[...] = jnp.zeros_like(acc_ref)

    # Masked token sum on the MXU: (TB,1,TS) x (TB,TS,H) -> (TB,1,H), f32 acc.
    acc_ref[...] += jax.lax.dot_general(
        mask_ref[...], tok_ref[...],
        dimension_numbers=(((2,), (1,)), ((0,), (0,))),
        preferred_element_type=jnp.float32)

    @pl.when(s == pl.num_programs(1) - 1)
    def _():
        acc = acc_ref[...]                                     # (TB, 1, H)
        inv_norm = jax.lax.rsqrt(                              # 1e-24 == (1e-12)^2
            jnp.maximum(jnp.sum(acc * acc, axis=-1, keepdims=True), 1e-24))
        out_ref[...] = ((acc * inv_norm)[:, 0, :]).astype(out_ref.dtype)


def mean_pool_normalize(token_embeddings, attention_mask):
    B, S, H = token_embeddings.shape
    tb = _choose_tb(B)
    itemsize = jnp.dtype(token_embeddings.dtype).itemsize
    ts, Sp = _choose_s_tiling(S, tb, H, itemsize)
    tok, mask = _prep_inputs(token_embeddings, attention_mask, Sp)

    grid = (pl.cdiv(B, tb), Sp // ts)
    return pl.pallas_call(
        _pool_norm_kernel,
        out_shape=jax.ShapeDtypeStruct((B, H), jnp.float32),
        grid_spec=pltpu.PrefetchScalarGridSpec(
            num_scalar_prefetch=0,
            grid=grid,
            in_specs=[
                pl.BlockSpec((tb, ts, H), lambda i, s: (i, s, 0)),
                pl.BlockSpec((tb, 1, ts), lambda i, s: (i, 0, s)),
            ],
            out_specs=pl.BlockSpec((tb, H), lambda i, s: (i, 0)),
            scratch_shapes=[pltpu.VMEM((tb, 1, H), jnp.float32)],
        ),
        compiler_params=pltpu.CompilerParams(
            dimension_semantics=("parallel", "arbitrary"),
            vmem_limit_bytes=_vmem_limit(),
        ),
    )(tok, mask)


# ---------------------------------------------------------------------------
# Kernel 2 (inference path): fused masked-mean-pool + L2-normalize + cosine
# similarity against the resident (pre-normalized, bf16) label table.
#   sim = (acc . lbl^T) / ||acc||   (count cancels; labels are unit rows)
# ---------------------------------------------------------------------------
def _fused_pool_sim_kernel(tok_ref, mask_ref, lb_ref, out_ref, acc_ref):
    s = pl.program_id(1)

    @pl.when(s == 0)
    def _():
        acc_ref[...] = jnp.zeros_like(acc_ref)

    acc_ref[...] += jax.lax.dot_general(
        mask_ref[...], tok_ref[...],
        dimension_numbers=(((2,), (1,)), ((0,), (0,))),
        preferred_element_type=jnp.float32)

    @pl.when(s == pl.num_programs(1) - 1)
    def _():
        acc = acc_ref[...]                                     # (TB, 1, H)
        inv_norm = jax.lax.rsqrt(
            jnp.maximum(jnp.sum(acc * acc, axis=-1, keepdims=True), 1e-24))
        a = ((acc * inv_norm)[:, 0, :]).astype(lb_ref.dtype)   # (TB, H), bf16
        # Contract H of both operands directly (no in-kernel transpose);
        # bf16 x bf16 -> f32 is the single-pass MXU path.
        out_ref[...] = jax.lax.dot_general(
            a, lb_ref[...],
            dimension_numbers=(((1,), (1,)), ((), ())),
            preferred_element_type=jnp.float32)


def prepare_label_table(lb_embedding, dtype=jnp.bfloat16):
    """One-time (init_lb_embedding-time) prep: L2-normalize, pad the label
    axis to a lane multiple, and cast to bf16 for the MXU similarity path."""
    L, H = lb_embedding.shape
    lb = lb_embedding.astype(jnp.float32)
    lb = lb * jax.lax.rsqrt(
        jnp.maximum(jnp.sum(lb * lb, axis=-1, keepdims=True), 1e-24))
    Lp = _round_up(max(L, 1), _LANE)
    if Lp != L:
        lb = jnp.pad(lb, ((0, Lp - L), (0, 0)))
    return lb.astype(dtype)


def similarity_inference(token_embeddings, attention_mask, lb_table, num_labels):
    B, S, H = token_embeddings.shape
    Lp, H2 = lb_table.shape
    assert H == H2 and Lp % _LANE == 0 and num_labels <= Lp

    tb = _choose_tb(B)
    itemsize = jnp.dtype(token_embeddings.dtype).itemsize
    label_bytes = Lp * H * jnp.dtype(lb_table.dtype).itemsize
    ts, Sp = _choose_s_tiling(S, tb, H, itemsize, reserved_bytes=label_bytes)
    # TODO(synk): if label_bytes alone approaches the VMEM budget (very large
    #             L*H, especially under v7x's 64 MiB), add an L-tile grid axis
    #             instead of keeping the whole table resident.
    tok, mask = _prep_inputs(token_embeddings, attention_mask, Sp)

    grid = (pl.cdiv(B, tb), Sp // ts)
    out = pl.pallas_call(
        _fused_pool_sim_kernel,
        out_shape=jax.ShapeDtypeStruct((B, Lp), jnp.float32),
        grid_spec=pltpu.PrefetchScalarGridSpec(
            num_scalar_prefetch=0,
            grid=grid,
            in_specs=[
                pl.BlockSpec((tb, ts, H), lambda i, s: (i, s, 0)),
                pl.BlockSpec((tb, 1, ts), lambda i, s: (i, 0, s)),
                _label_spec(Lp, H),
            ],
            out_specs=pl.BlockSpec((tb, Lp), lambda i, s: (i, 0)),
            scratch_shapes=[pltpu.VMEM((tb, 1, H), jnp.float32)],
        ),
        compiler_params=pltpu.CompilerParams(
            dimension_semantics=("parallel", "arbitrary"),
            vmem_limit_bytes=_vmem_limit(),
        ),
    )(tok, mask, lb_table)
    return out[:, :num_labels]


# ---------------------------------------------------------------------------
# Encoder stub (plain-JAX glue): deterministic embedding lookup.
# TODO(synk): the full AutoModel transformer encoder has no clean single-kernel
#             Pallas equivalent and is stubbed by an embedding table here.
# ---------------------------------------------------------------------------
def make_encoder(vocab_size, hidden, key):
    table = jax.random.normal(key, (vocab_size, hidden), dtype=jnp.float32) * 0.02

    def encode(input_ids):
        # returns "last_hidden_state", i.e. model_output[0]: (B, S, H)
        return table[input_ids]

    return encode


# ---------------------------------------------------------------------------
# Similarity module forward (inference path and training path)
# ---------------------------------------------------------------------------
def similarity_forward(encode_fn, lb_table, num_labels,
                       sim_input_ids, sim_attention_mask,
                       batch_label=None, lb_ids=None,
                       lb_input_ids=None, lb_attention_mask=None):
    ins_outs = encode_fn(sim_input_ids)                         # (B, S, H)
    if batch_label is None:
        # Fused pool + normalize + cos_sim: pooled (B, H) never hits HBM.
        return similarity_inference(ins_outs, sim_attention_mask,
                                    lb_table, num_labels)
    lb_outs = encode_fn(lb_input_ids)
    ins_emb = mean_pool_normalize(ins_outs, sim_attention_mask)
    lb_emb = mean_pool_normalize(lb_outs, lb_attention_mask)
    return ins_emb, lb_emb, lb_ids


# ---------------------------------------------------------------------------
# Pure-JAX references (correctness check)
# ---------------------------------------------------------------------------
def _ref_pool_norm(tok, mask):
    m = mask[..., None].astype(jnp.float32)
    summed = jnp.sum(tok.astype(jnp.float32) * m, axis=1)
    counts = jnp.maximum(jnp.sum(m, axis=1), 1e-9)
    pooled = summed / counts
    n = jnp.maximum(jnp.linalg.norm(pooled, axis=1, keepdims=True), 1e-12)
    return pooled / n


def _ref_cos_sim(a, b):
    a = a / jnp.maximum(jnp.linalg.norm(a, axis=-1, keepdims=True), 1e-12)
    b = b / jnp.maximum(jnp.linalg.norm(b, axis=-1, keepdims=True), 1e-12)
    return a @ b.T


if __name__ == "__main__":
    key = jax.random.PRNGKey(0)
    k_emb, k_ids, k_mask, k_lb_ids, k_lb_mask = jax.random.split(key, 5)

    VOCAB, B, S, H, L = 100, 2, 8, 32, 16

    encode_fn = make_encoder(VOCAB, H, k_emb)

    # instance batch
    sim_input_ids = jax.random.randint(k_ids, (B, S), 0, VOCAB)
    sim_attention_mask = (jax.random.uniform(k_mask, (B, S)) > 0.25).astype(jnp.float32)

    # label set (emulates init_lb_embedding): pool + normalize each label text,
    # then a ONE-TIME table prep (normalize + pad L to 128 + cast to bf16).
    lb_input_ids = jax.random.randint(k_lb_ids, (L, S), 0, VOCAB)
    lb_attention_mask = (jax.random.uniform(k_lb_mask, (L, S)) > 0.25).astype(jnp.float32)
    lb_tok = encode_fn(lb_input_ids)
    lb_embedding = mean_pool_normalize(lb_tok, lb_attention_mask)           # (L, H)
    lb_table = prepare_label_table(lb_embedding)                            # (Lp, H) bf16
    jax.block_until_ready((lb_embedding, lb_table))

    # inference path: batch_label is None -> fused cosine similarity vs lb table
    sim = similarity_forward(encode_fn, lb_table, L, sim_input_ids, sim_attention_mask)
    sim = jax.block_until_ready(sim)
    assert sim.shape == (B, L)

    # training path: returns (ins_emb, lb_emb, lb_ids)
    ins_emb, lb_emb, lb_ids = similarity_forward(
        encode_fn, lb_table, L, sim_input_ids, sim_attention_mask,
        batch_label=jnp.zeros((B,), jnp.int32), lb_ids=jnp.arange(B),
        lb_input_ids=lb_input_ids[:B], lb_attention_mask=lb_attention_mask[:B])
    jax.block_until_ready((ins_emb, lb_emb))
    assert ins_emb.shape == (B, H) and lb_emb.shape == (B, H)

    # correctness vs pure-JAX reference
    ins_tok = encode_fn(sim_input_ids)
    ref_lb_embedding = _ref_pool_norm(lb_tok, lb_attention_mask)
    ref_ins = _ref_pool_norm(ins_tok, sim_attention_mask)
    ref_sim = _ref_cos_sim(ref_ins, ref_lb_embedding)
    ref_lb_b = _ref_pool_norm(encode_fn(lb_input_ids[:B]), lb_attention_mask[:B])

    assert jnp.allclose(lb_embedding, ref_lb_embedding, atol=2e-3)
    # fused path carries the query/label through bf16 for the MXU -> looser tol
    assert jnp.allclose(sim, ref_sim, atol=2e-2)
    assert jnp.allclose(ins_emb, ref_ins, atol=2e-3)
    assert jnp.allclose(lb_emb, ref_lb_b, atol=2e-3)

    print("KERNEL_OK")
</pallas_src>

<mosaic_0001>
module attributes {stable_mosaic.version = 11 : i64} {
  func.func @_pool_norm_kernel(%arg0: i32, %arg1: i32, %arg2: memref<16x8x32xf32, #tpu.memory_space<vmem>>, %arg3: memref<16x1x8xf32, #tpu.memory_space<vmem>>, %arg4: memref<16x32xf32, #tpu.memory_space<vmem>>, %arg5: memref<16x1x32xf32, #tpu.memory_space<vmem>>) attributes {dimension_semantics = [#tpu.dimension_semantics<parallel>, #tpu.dimension_semantics<arbitrary>], iteration_bounds = array<i64: 1, 1>, scalar_prefetch = 0 : i64, scratch_operands = 1 : i64, tpu.core_type = #tpu.core_type<tc>, window_params = [{transform_indices = @transform_0, window_bounds = array<i64: 16, 8, 32>}, {transform_indices = @transform_1, window_bounds = array<i64: 16, 1, 8>}, {transform_indices = @transform_2, window_bounds = array<i64: 16, 32>}]} {
    %c0_i32 = arith.constant 0 : i32
    %0 = arith.cmpi eq, %arg1, %c0_i32 : i32
    %1 = arith.extui %0 : i1 to i32
    %c0_i32_0 = arith.constant 0 : i32
    %2 = arith.cmpi ne, %1, %c0_i32_0 : i32
    scf.if %2 {
      %cst_14 = arith.constant 0.000000e+00 : f32
      %12 = vector.broadcast %cst_14 : f32 to vector<16x1x32xf32>
      %c0_15 = arith.constant 0 : index
      %c0_16 = arith.constant 0 : index
      %c0_17 = arith.constant 0 : index
      %13 = vector.load %arg5[%c0_15, %c0_16, %c0_17] : memref<16x1x32xf32, #tpu.memory_space<vmem>>, vector<16x1x32xf32>
      tpu.vector_store %arg5[%c0_15, %c0_16, %c0_17], %12 {strides = array<i32>} : memref<16x1x32xf32, #tpu.memory_space<vmem>>, vector<16x1x32xf32>,
    } else {
    }
    %c0 = arith.constant 0 : index
    %c0_1 = arith.constant 0 : index
    %c0_2 = arith.constant 0 : index
    %3 = vector.load %arg5[%c0, %c0_1, %c0_2] : memref<16x1x32xf32, #tpu.memory_space<vmem>>, vector<16x1x32xf32>
    %c0_3 = arith.constant 0 : index
    %c0_4 = arith.constant 0 : index
    %c0_5 = arith.constant 0 : index
    %4 = vector.load %arg3[%c0_3, %c0_4, %c0_5] : memref<16x1x8xf32, #tpu.memory_space<vmem>>, vector<16x1x8xf32>
    %c0_6 = arith.constant 0 : index
    %c0_7 = arith.constant 0 : index
    %c0_8 = arith.constant 0 : index
    %5 = vector.load %arg2[%c0_6, %c0_7, %c0_8] : memref<16x8x32xf32, #tpu.memory_space<vmem>>, vector<16x8x32xf32>
    %cst = arith.constant dense<0.000000e+00> : vector<16x1x32xf32>
    %6 = tpu.matmul %4, %5, %cst {dimension_numbers = #tpu.dot_dimension_numbers<[2], [1], [1], [2], [0, 0, 0, 1, 1, 2], [0], [0]>} : vector<16x1x8xf32>, vector<16x8x32xf32>, vector<16x1x32xf32> -> vector<16x1x32xf32>
    %7 = arith.addf %3, %6 : vector<16x1x32xf32>
    %c0_9 = arith.constant 0 : index
    %c0_10 = arith.constant 0 : index
    %c0_11 = arith.constant 0 : index
    %8 = vector.load %arg5[%c0_9, %c0_10, %c0_11] : memref<16x1x32xf32, #tpu.memory_space<vmem>>, vector<16x1x32xf32>
    tpu.vector_store %arg5[%c0_9, %c0_10, %c0_11], %7 {strides = array<i32>} : memref<16x1x32xf32, #tpu.memory_space<vmem>>, vector<16x1x32xf32>,
    %c0_i32_12 = arith.constant 0 : i32
    %9 = arith.cmpi eq, %arg1, %c0_i32_12 : i32
    %10 = arith.extui %9 : i1 to i32
    %c0_i32_13 = arith.constant 0 : i32
    %11 = arith.cmpi ne, %10, %c0_i32_13 : i32
    scf.if %11 {
      %c0_14 = arith.constant 0 : index
      %c0_15 = arith.constant 0 : index
      %c0_16 = arith.constant 0 : index
      %12 = vector.load %arg5[%c0_14, %c0_15, %c0_16] : memref<16x1x32xf32, #tpu.memory_space<vmem>>, vector<16x1x32xf32>
      %13 = arith.mulf %12, %12 : vector<16x1x32xf32>
      %cst_17 = arith.constant dense<0.000000e+00> : vector<16x1xf32>
      %14 = vector.multi_reduction <add>, %13, %cst_17 [2] : vector<16x1x32xf32> to vector<16x1xf32>
      %15 = vector.shape_cast %14 : vector<16x1xf32> to vector<16x1x1xf32>
      %cst_18 = arith.constant 1.000000e-24 : f32
      %16 = vector.broadcast %cst_18 : f32 to vector<16x1x1xf32>
      %17 = arith.maximumf %15, %16 : vector<16x1x1xf32>
      %18 = math.rsqrt %17 : vector<16x1x1xf32>
      %19 = vector.broadcast %18 : vector<16x1x1xf32> to vector<16x1x32xf32>
      %20 = arith.mulf %12, %19 : vector<16x1x32xf32>
      %21 = vector.shape_cast %20 : vector<16x1x32xf32> to vector<16x32xf32>
      %c0_19 = arith.constant 0 : index
      %c0_20 = arith.constant 0 : index
      %22 = vector.load %arg4[%c0_19, %c0_20] : memref<16x32xf32, #tpu.memory_space<vmem>>, vector<16x32xf32>
      tpu.vector_store %arg4[%c0_19, %c0_20], %21 {strides = array<i32>} : memref<16x32xf32, #tpu.memory_space<vmem>>, vector<16x32xf32>,
    } else {
    }
    return
  }
  func.func @transform_0(%arg0: i32, %arg1: i32) -> (i32, i32, i32) {
    %c0_i32 = arith.constant 0 : i32
    %c0_i32_0 = arith.constant 0 : i32
    return %arg0, %arg1, %c0_i32 : i32, i32, i32
  }
  func.func @transform_1(%arg0: i32, %arg1: i32) -> (i32, i32, i32) {
    %c0_i32 = arith.constant 0 : i32
    %c0_i32_0 = arith.constant 0 : i32
    return %arg0, %c0_i32, %arg1 : i32, i32, i32
  }
  func.func @transform_2(%arg0: i32, %arg1: i32) -> (i32, i32) {
    %c0_i32 = arith.constant 0 : i32
    %c0_i32_0 = arith.constant 0 : i32
    return %arg0, %c0_i32 : i32, i32
  }
}

</mosaic_0001>

<llo_original>
// kernel: tpu_custom_call.1
$region0: #{tpu_custom_call.1}
  #allocation0 [shape = 'u32[]', space=smem, size = 0x4, offset = 0x4, fixed_abs, tag = 'smem constant byte address 0x4 - core index']
  #allocation1 [shape = 'u32[72,128]{1,0:T(1,128)}', space=vmem, size = 0x9000, scoped, tag = 'internal scratch']
  #allocation2 [shape = 'f32[16,1,32]{2,1,0:T(1,128)}', space=vmem, size = 0x2000, scoped, tag = 'scratch operand']
  %s0 = inlined_call_operand.hbm [shape: f32[16,8,32], index: 0, kind: input, shape index: {}]
  %s1 = inlined_call_operand.vmem [shape: f32[16,1,8], index: 1, kind: input, shape index: {}]
  %s2 = inlined_call_operand.hbm [shape: f32[16,32], index: 2, kind: output, shape index: {}]
  %s3 = sld [smem:[#allocation0]]
  $region30: #{tpu_custom_call.1} parent=0
    _
  %s5 = ssub.s32 1, %s3
  %s6 = scalar_select 0, %s5, %s3
  $region1: #{tpu_custom_call.1} parent=0
    #allocation3 [shape = 'u8[65536]{0}', space=vmem, size = 0x10000, scoped, tag = 'input window, operand 0, single buffered']
    #allocation4 [shape = 's32[1]{0}', space=sflag, size = 0x4, scoped, tag = 'scoped memory for tpu_custom_call.1']
    #allocation5 [shape = 's32[1]{0}', space=sflag, size = 0x4, scoped, tag = 'scoped memory for tpu_custom_call.1']
    #allocation6 [shape = 'u8[8192]{0}', space=vmem, size = 0x2000, scoped, tag = 'output window, operand 0, single buffered']
    %7 = vsyncpa [#allocation4], 0
    %8 = vsyncpa [#allocation5], 0
    // Predicated region
    $region2: #{tpu_custom_call.1} parent=1 // pred_check
      _
    $region3: #{tpu_custom_call.1} parent=1 // pred_check_branch
      %10 = sbr.rel (0) target = $region5
    $region4: #{tpu_custom_call.1} parent=1 // pred_region
      %12 = vsyncadd [#allocation4], 0
      %s13 = sshll.u32 %s0, 4
      %s14 = int_to_ptr.hbm [resolvable:$true] %s13
      %s15 = sshll.u32 [#allocation3], 4
      %s16 = int_to_ptr.vmem [resolvable:$true] %s15
      %21 = dma.hbm_to_vmem [thread:$0]  %s14, 2048, %s16, [#allocation4], 128, 128, 8
    $region5: #{tpu_custom_call.1} parent=1 // pred_fallthru
      _
    // Predicated region
    $region6: #{tpu_custom_call.1} parent=1 // pred_check
      _
    $region7: #{tpu_custom_call.1} parent=1 // pred_check_branch
      %23 = sbr.rel (0) target = $region9
    $region8: #{tpu_custom_call.1} parent=1 // pred_region
      _
    $region9: #{tpu_custom_call.1} parent=1 // pred_fallthru
      _
    // Predicated region
    $region10: #{tpu_custom_call.1} parent=1 // pred_check
      _
    $region11: #{tpu_custom_call.1} parent=1 // pred_check_branch
      %25 = sbr.rel (0) target = $region13
    $region12: #{tpu_custom_call.1} parent=1 // pred_region
      %27 = dma.done [#allocation4], 2048
    $region13: #{tpu_custom_call.1} parent=1 // pred_fallthru
      _
    %p28 = scmp.eq.s32.totalorder 0, 0
    // Predicated region
    $region14: #{tpu_custom_call.1} parent=1 // pred_check
      %p29 = pneg %p28
    $region15: #{tpu_custom_call.1} parent=1 // pred_check_branch
      %31 = sbr.rel (%p29) target = $region17
    $region16: #{tpu_custom_call.1} parent=1 // pred_region
      %vm32 = vcmask 253952
      %33 = vst.msk [vmem:[#allocation2] sm:$0x1] %vm32, 0.0
      %34 = vst.msk [vmem:[#allocation2 + $0x1] sm:$0x1] %vm32, 0.0
      %35 = vst.msk [vmem:[#allocation2 + $0x2] sm:$0x1] %vm32, 0.0
      %36 = vst.msk [vmem:[#allocation2 + $0x3] sm:$0x1] %vm32, 0.0
      %37 = vst.msk [vmem:[#allocation2 + $0x4] sm:$0x1] %vm32, 0.0
      %38 = vst.msk [vmem:[#allocation2 + $0x5] sm:$0x1] %vm32, 0.0
      %39 = vst.msk [vmem:[#allocation2 + $0x6] sm:$0x1] %vm32, 0.0
      %40 = vst.msk [vmem:[#allocation2 + $0x7] sm:$0x1] %vm32, 0.0
      %41 = vst.msk [vmem:[#allocation2 + $0x8] sm:$0x1] %vm32, 0.0
      %42 = vst.msk [vmem:[#allocation2 + $0x9] sm:$0x1] %vm32, 0.0
      %43 = vst.msk [vmem:[#allocation2 + $0xa] sm:$0x1] %vm32, 0.0
      %44 = vst.msk [vmem:[#allocation2 + $0xb] sm:$0x1] %vm32, 0.0
      %45 = vst.msk [vmem:[#allocation2 + $0xc] sm:$0x1] %vm32, 0.0
      %46 = vst.msk [vmem:[#allocation2 + $0xd] sm:$0x1] %vm32, 0.0
      %47 = vst.msk [vmem:[#allocation2 + $0xe] sm:$0x1] %vm32, 0.0
      %48 = vst.msk [vmem:[#allocation2 + $0xf] sm:$0x1] %vm32, 0.0
    $region17: #{tpu_custom_call.1} parent=1 // pred_fallthru
      _
    %v49 = vld [vmem:[#allocation2] sm:$0x1]
    %v50 = vld [vmem:[#allocation2 + $0x1] sm:$0x1]
    %v51 = vld [vmem:[#allocation2 + $0x2] sm:$0x1]
    %v52 = vld [vmem:[#allocation2 + $0x3] sm:$0x1]
    %v53 = vld [vmem:[#allocation2 + $0x4] sm:$0x1]
    %v54 = vld [vmem:[#allocation2 + $0x5] sm:$0x1]
    %v55 = vld [vmem:[#allocation2 + $0x6] sm:$0x1]
    %v56 = vld [vmem:[#allocation2 + $0x7] sm:$0x1]
    %v57 = vld [vmem:[#allocation2 + $0x8] sm:$0x1]
    %v58 = vld [vmem:[#allocation2 + $0x9] sm:$0x1]
    %v59 = vld [vmem:[#allocation2 + $0xa] sm:$0x1]
    %v60 = vld [vmem:[#allocation2 + $0xb] sm:$0x1]
    %v61 = vld [vmem:[#allocation2 + $0xc] sm:$0x1]
    %v62 = vld [vmem:[#allocation2 + $0xd] sm:$0x1]
    %v63 = vld [vmem:[#allocation2 + $0xe] sm:$0x1]
    %v64 = vld [vmem:[#allocation2 + $0xf] sm:$0x1]
    %v65 = vld [vmem:[%s1] sm:$0x1]
    %v66 = vld [vmem:[%s1 + $0x1] sm:$0x1]
    %v67 = vld [vmem:[%s1 + $0x2] sm:$0x1]
    %v68 = vld [vmem:[%s1 + $0x3] sm:$0x1]
    %v69 = vld [vmem:[%s1 + $0x4] sm:$0x1]
    %v70 = vld [vmem:[%s1 + $0x5] sm:$0x1]
    %v71 = vld [vmem:[%s1 + $0x6] sm:$0x1]
    %v72 = vld [vmem:[%s1 + $0x7] sm:$0x1]
    %v73 = vld [vmem:[%s1 + $0x8] sm:$0x1]
    %v74 = vld [vmem:[%s1 + $0x9] sm:$0x1]
    %v75 = vld [vmem:[%s1 + $0xa] sm:$0x1]
    %v76 = vld [vmem:[%s1 + $0xb] sm:$0x1]
    %v77 = vld [vmem:[%s1 + $0xc] sm:$0x1]
    %v78 = vld [vmem:[%s1 + $0xd] sm:$0x1]
    %v79 = vld [vmem:[%s1 + $0xe] sm:$0x1]
    %v80 = vld [vmem:[%s1 + $0xf] sm:$0x1]
    %v81 = vld [vmem:[#allocation3] sm:$0xff]
    %v82 = vld [vmem:[#allocation3 + $0x8] sm:$0xff]
    %v83 = vld [vmem:[#allocation3 + $0x10] sm:$0xff]
    %v84 = vld [vmem:[#allocation3 + $0x18] sm:$0xff]
    %v85 = vld [vmem:[#allocation3 + $0x20] sm:$0xff]
    %v86 = vld [vmem:[#allocation3 + $0x28] sm:$0xff]
    %v87 = vld [vmem:[#allocation3 + $0x30] sm:$0xff]
    %v88 = vld [vmem:[#allocation3 + $0x38] sm:$0xff]
    %v89 = vld [vmem:[#allocation3 + $0x40] sm:$0xff]
    %v90 = vld [vmem:[#allocation3 + $0x48] sm:$0xff]
    %v91 = vld [vmem:[#allocation3 + $0x50] sm:$0xff]
    %v92 = vld [vmem:[#allocation3 + $0x58] sm:$0xff]
    %v93 = vld [vmem:[#allocation3 + $0x60] sm:$0xff]
    %v94 = vld [vmem:[#allocation3 + $0x68] sm:$0xff]
    %v95 = vld [vmem:[#allocation3 + $0x70] sm:$0xff]
    %v96 = vld [vmem:[#allocation3 + $0x78] sm:$0xff]
    %vm97 = vcmask 64512
    %v99 = vsel %vm97, %v65, 0
    %101 = vmatpush.msra.mxu0 0.0
    %102 = vmatpush.msra.mxu0 0.0
    %103 = vmatpush.msra.mxu0 0.0
    %104 = vmatpush.msra.mxu0 0.0
    %105 = vmatpush.msra.mxu0 0.0
    %106 = vmatpush.msra.mxu0 0.0
    %107 = vmatpush.msra.mxu0 0.0
    %108 = vmatpush.msra.mxu0 0.0
    %109 = vmatpush.msra.mxu0 0.0
    %110 = vmatpush.msra.mxu0 0.0
    %111 = vmatpush.msra.mxu0 0.0
    %112 = vmatpush.msra.mxu0 0.0
    %113 = vmatpush.msra.mxu0 0.0
    %114 = vmatpush.msra.mxu0 0.0
    %115 = vmatpush.msra.mxu0 0.0
    %116 = vmatpush.msra.mxu0 %v81
    %117 = vmatmul.f32.gmra.mxu0 %v99
    %v118 = vpop.f32.mrf.mxu0
    %v119 = vadd.f32 0.0, %v118
    %120 = vdwg.mxu0
    %v122 = vsel %vm97, %v66, 0
    %124 = vmatpush.msra.mxu0 0.0
    %125 = vmatpush.msra.mxu0 0.0
    %126 = vmatpush.msra.mxu0 0.0
    %127 = vmatpush.msra.mxu0 0.0
    %128 = vmatpush.msra.mxu0 0.0
    %129 = vmatpush.msra.mxu0 0.0
    %130 = vmatpush.msra.mxu0 0.0
    %131 = vmatpush.msra.mxu0 0.0
    %132 = vmatpush.msra.mxu0 0.0
    %133 = vmatpush.msra.mxu0 0.0
    %134 = vmatpush.msra.mxu0 0.0
    %135 = vmatpush.msra.mxu0 0.0
    %136 = vmatpush.msra.mxu0 0.0
    %137 = vmatpush.msra.mxu0 0.0
    %138 = vmatpush.msra.mxu0 0.0
    %139 = vmatpush.msra.mxu0 %v82
    %140 = vmatmul.f32.gmra.mxu0 %v122
    %v141 = vpop.f32.mrf.mxu0
    %v142 = vadd.f32 0.0, %v141
    %143 = vdwg.mxu0
    %v145 = vsel %vm97, %v67, 0
    %147 = vmatpush.msra.mxu0 0.0
    %148 = vmatpush.msra.mxu0 0.0
    %149 = vmatpush.msra.mxu0 0.0
    %150 = vmatpush.msra.mxu0 0.0
    %151 = vmatpush.msra.mxu0 0.0
    %152 = vmatpush.msra.mxu0 0.0
    %153 = vmatpush.msra.mxu0 0.0
    %154 = vmatpush.msra.mxu0 0.0
    %155 = vmatpush.msra.mxu0 0.0
    %156 = vmatpush.msra.mxu0 0.0
    %157 = vmatpush.msra.mxu0 0.0
    %158 = vmatpush.msra.mxu0 0.0
    %159 = vmatpush.msra.mxu0 0.0
    %160 = vmatpush.msra.mxu0 0.0
    %161 = vmatpush.msra.mxu0 0.0
    %162 = vmatpush.msra.mxu0 %v83
    %163 = vmatmul.f32.gmra.mxu0 %v145
    %v164 = vpop.f32.mrf.mxu0
    %v165 = vadd.f32 0.0, %v164
    %166 = vdwg.mxu0
    %v168 = vsel %vm97, %v68, 0
    %170 = vmatpush.msra.mxu0 0.0
    %171 = vmatpush.msra.mxu0 0.0
    %172 = vmatpush.msra.mxu0 0.0
    %173 = vmatpush.msra.mxu0 0.0
    %174 = vmatpush.msra.mxu0 0.0
    %175 = vmatpush.msra.mxu0 0.0
    %176 = vmatpush.msra.mxu0 0.0
    %177 = vmatpush.msra.mxu0 0.0
    %178 = vmatpush.msra.mxu0 0.0
    %179 = vmatpush.msra.mxu0 0.0
    %180 = vmatpush.msra.mxu0 0.0
    %181 = vmatpush.msra.mxu0 0.0
    %182 = vmatpush.msra.mxu0 0.0
    %183 = vmatpush.msra.mxu0 0.0
    %184 = vmatpush.msra.mxu0 0.0
    %185 = vmatpush.msra.mxu0 %v84
    %186 = vmatmul.f32.gmra.mxu0 %v168
    %v187 = vpop.f32.mrf.mxu0
    %v188 = vadd.f32 0.0, %v187
    %189 = vdwg.mxu0
    %v191 = vsel %vm97, %v69, 0
    %193 = vmatpush.msra.mxu0 0.0
    %194 = vmatpush.msra.mxu0 0.0
    %195 = vmatpush.msra.mxu0 0.0
    %196 = vmatpush.msra.mxu0 0.0
    %197 = vmatpush.msra.mxu0 0.0
    %198 = vmatpush.msra.mxu0 0.0
    %199 = vmatpush.msra.mxu0 0.0
    %200 = vmatpush.msra.mxu0 0.0
    %201 = vmatpush.msra.mxu0 0.0
    %202 = vmatpush.msra.mxu0 0.0
    %203 = vmatpush.msra.mxu0 0.0
    %204 = vmatpush.msra.mxu0 0.0
    %205 = vmatpush.msra.mxu0 0.0
    %206 = vmatpush.msra.mxu0 0.0
    %207 = vmatpush.msra.mxu0 0.0
    %208 = vmatpush.msra.mxu0 %v85
    %209 = vmatmul.f32.gmra.mxu0 %v191
    %v210 = vpop.f32.mrf.mxu0
    %v211 = vadd.f32 0.0, %v210
    %212 = vdwg.mxu0
    %v214 = vsel %vm97, %v70, 0
    %216 = vmatpush.msra.mxu0 0.0
    %217 = vmatpush.msra.mxu0 0.0
    %218 = vmatpush.msra.mxu0 0.0
    %219 = vmatpush.msra.mxu0 0.0
    %220 = vmatpush.msra.mxu0 0.0
    %221 = vmatpush.msra.mxu0 0.0
    %222 = vmatpush.msra.mxu0 0.0
    %223 = vmatpush.msra.mxu0 0.0
    %224 = vmatpush.msra.mxu0 0.0
    %225 = vmatpush.msra.mxu0 0.0
    %226 = vmatpush.msra.mxu0 0.0
    %227 = vmatpush.msra.mxu0 0.0
    %228 = vmatpush.msra.mxu0 0.0
    %229 = vmatpush.msra.mxu0 0.0
    %230 = vmatpush.msra.mxu0 0.0
    %231 = vmatpush.msra.mxu0 %v86
    %232 = vmatmul.f32.gmra.mxu0 %v214
    %v233 = vpop.f32.mrf.mxu0
    %v234 = vadd.f32 0.0, %v233
    %235 = vdwg.mxu0
    %v237 = vsel %vm97, %v71, 0
    %239 = vmatpush.msra.mxu0 0.0
    %240 = vmatpush.msra.mxu0 0.0
    %241 = vmatpush.msra.mxu0 0.0
    %242 = vmatpush.msra.mxu0 0.0
    %243 = vmatpush.msra.mxu0 0.0
    %244 = vmatpush.msra.mxu0 0.0
    %245 = vmatpush.msra.mxu0 0.0
    %246 = vmatpush.msra.mxu0 0.0
    %247 = vmatpush.msra.mxu0 0.0
    %248 = vmatpush.msra.mxu0 0.0
    %249 = vmatpush.msra.mxu0 0.0
    %250 = vmatpush.msra.mxu0 0.0
    %251 = vmatpush.msra.mxu0 0.0
    %252 = vmatpush.msra.mxu0 0.0
    %253 = vmatpush.msra.mxu0 0.0
    %254 = vmatpush.msra.mxu0 %v87
    %255 = vmatmul.f32.gmra.mxu0 %v237
    %v256 = vpop.f32.mrf.mxu0
    %v257 = vadd.f32 0.0, %v256
    %258 = vdwg.mxu0
    %v260 = vsel %vm97, %v72, 0
    %262 = vmatpush.msra.mxu0 0.0
    %263 = vmatpush.msra.mxu0 0.0
    %264 = vmatpush.msra.mxu0 0.0
    %265 = vmatpush.msra.mxu0 0.0
    %266 = vmatpush.msra.mxu0 0.0
    %267 = vmatpush.msra.mxu0 0.0
    %268 = vmatpush.msra.mxu0 0.0
    %269 = vmatpush.msra.mxu0 0.0
    %270 = vmatpush.msra.mxu0 0.0
    %271 = vmatpush.msra.mxu0 0.0
    %272 = vmatpush.msra.mxu0 0.0
    %273 = vmatpush.msra.mxu0 0.0
    %274 = vmatpush.msra.mxu0 0.0
    %275 = vmatpush.msra.mxu0 0.0
    %276 = vmatpush.msra.mxu0 0.0
    %277 = vmatpush.msra.mxu0 %v88
    %278 = vmatmul.f32.gmra.mxu0 %v260
    %v279 = vpop.f32.mrf.mxu0
    %v280 = vadd.f32 0.0, %v279
    %281 = vdwg.mxu0
    %v283 = vsel %vm97, %v73, 0
    %285 = vmatpush.msra.mxu0 0.0
    %286 = vmatpush.msra.mxu0 0.0
    %287 = vmatpush.msra.mxu0 0.0
    %288 = vmatpush.msra.mxu0 0.0
    %289 = vmatpush.msra.mxu0 0.0
    %290 = vmatpush.msra.mxu0 0.0
    %291 = vmatpush.msra.mxu0 0.0
    %292 = vmatpush.msra.mxu0 0.0
    %293 = vmatpush.msra.mxu0 0.0
    %294 = vmatpush.msra.mxu0 0.0
    %295 = vmatpush.msra.mxu0 0.0
    %296 = vmatpush.msra.mxu0 0.0
    %297 = vmatpush.msra.mxu0 0.0
    %298 = vmatpush.msra.mxu0 0.0
    %299 = vmatpush.msra.mxu0 0.0
    %300 = vmatpush.msra.mxu0 %v89
    %301 = vmatmul.f32.gmra.mxu0 %v283
    %v302 = vpop.f32.mrf.mxu0
    %v303 = vadd.f32 0.0, %v302
    %304 = vdwg.mxu0
    %v306 = vsel %vm97, %v74, 0
    %308 = vmatpush.msra.mxu0 0.0
    %309 = vmatpush.msra.mxu0 0.0
    %310 = vmatpush.msra.mxu0 0.0
    %311 = vmatpush.msra.mxu0 0.0
    %312 = vmatpush.msra.mxu0 0.0
    %313 = vmatpush.msra.mxu0 0.0
    %314 = vmatpush.msra.mxu0 0.0
    %315 = vmatpush.msra.mxu0 0.0
    %316 = vmatpush.msra.mxu0 0.0
    %317 = vmatpush.msra.mxu0 0.0
    %318 = vmatpush.msra.mxu0 0.0
    %319 = vmatpush.msra.mxu0 0.0
    %320 = vmatpush.msra.mxu0 0.0
    %321 = vmatpush.msra.mxu0 0.0
    %322 = vmatpush.msra.mxu0 0.0
    %323 = vmatpush.msra.mxu0 %v90
    %324 = vmatmul.f32.gmra.mxu0 %v306
    %v325 = vpop.f32.mrf.mxu0
    %v326 = vadd.f32 0.0, %v325
    %327 = vdwg.mxu0
    %v329 = vsel %vm97, %v75, 0
    %331 = vmatpush.msra.mxu0 0.0
    %332 = vmatpush.msra.mxu0 0.0
    %333 = vmatpush.msra.mxu0 0.0
    %334 = vmatpush.msra.mxu0 0.0
    %335 = vmatpush.msra.mxu0 0.0
    %336 = vmatpush.msra.mxu0 0.0
    %337 = vmatpush.msra.mxu0 0.0
    %338 = vmatpush.msra.mxu0 0.0
    %339 = vmatpush.msra.mxu0 0.0
    %340 = vmatpush.msra.mxu0 0.0
    %341 = vmatpush.msra.mxu0 0.0
    %342 = vmatpush.msra.mxu0 0.0
    %343 = vmatpush.msra.mxu0 0.0
    %344 = vmatpush.msra.mxu0 0.0
    %345 = vmatpush.msra.mxu0 0.0
    %346 = vmatpush.msra.mxu0 %v91
    %347 = vmatmul.f32.gmra.mxu0 %v329
    %v348 = vpop.f32.mrf.mxu0
    %v349 = vadd.f32 0.0, %v348
    %350 = vdwg.mxu0
    %v352 = vsel %vm97, %v76, 0
    %354 = vmatpush.msra.mxu0 0.0
    %355 = vmatpush.msra.mxu0 0.0
    %356 = vmatpush.msra.mxu0 0.0
    %357 = vmatpush.msra.mxu0 0.0
    %358 = vmatpush.msra.mxu0 0.0
    %359 = vmatpush.msra.mxu0 0.0
    %360 = vmatpush.msra.mxu0 0.0
    %361 = vmatpush.msra.mxu0 0.0
    %362 = vmatpush.msra.mxu0 0.0
    %363 = vmatpush.msra.mxu0 0.0
    %364 = vmatpush.msra.mxu0 0.0
    %365 = vmatpush.msra.mxu0 0.0
    %366 = vmatpush.msra.mxu0 0.0
    %367 = vmatpush.msra.mxu0 0.0
    %368 = vmatpush.msra.mxu0 0.0
    %369 = vmatpush.msra.mxu0 %v92
    %370 = vmatmul.f32.gmra.mxu0 %v352
    %v371 = vpop.f32.mrf.mxu0
    %v372 = vadd.f32 0.0, %v371
    %373 = vdwg.mxu0
    %v375 = vsel %vm97, %v77, 0
    %377 = vmatpush.msra.mxu0 0.0
    %378 = vmatpush.msra.mxu0 0.0
    %379 = vmatpush.msra.mxu0 0.0
    %380 = vmatpush.msra.mxu0 0.0
    %381 = vmatpush.msra.mxu0 0.0
    %382 = vmatpush.msra.mxu0 0.0
    %383 = vmatpush.msra.mxu0 0.0
    %384 = vmatpush.msra.mxu0 0.0
    %385 = vmatpush.msra.mxu0 0.0
    %386 = vmatpush.msra.mxu0 0.0
    %387 = vmatpush.msra.mxu0 0.0
    %388 = vmatpush.msra.mxu0 0.0
    %389 = vmatpush.msra.mxu0 0.0
    %390 = vmatpush.msra.mxu0 0.0
    %391 = vmatpush.msra.mxu0 0.0
    %392 = vmatpush.msra.mxu0 %v93
    %393 = vmatmul.f32.gmra.mxu0 %v375
    %v394 = vpop.f32.mrf.mxu0
    %v395 = vadd.f32 0.0, %v394
    %396 = vdwg.mxu0
    %v398 = vsel %vm97, %v78, 0
    %400 = vmatpush.msra.mxu0 0.0
    %401 = vmatpush.msra.mxu0 0.0
    %402 = vmatpush.msra.mxu0 0.0
    %403 = vmatpush.msra.mxu0 0.0
    %404 = vmatpush.msra.mxu0 0.0
    %405 = vmatpush.msra.mxu0 0.0
    %406 = vmatpush.msra.mxu0 0.0
    %407 = vmatpush.msra.mxu0 0.0
    %408 = vmatpush.msra.mxu0 0.0
    %409 = vmatpush.msra.mxu0 0.0
    %410 = vmatpush.msra.mxu0 0.0
    %411 = vmatpush.msra.mxu0 0.0
    %412 = vmatpush.msra.mxu0 0.0
    %413 = vmatpush.msra.mxu0 0.0
    %414 = vmatpush.msra.mxu0 0.0
    %415 = vmatpush.msra.mxu0 %v94
    %416 = vmatmul.f32.gmra.mxu0 %v398
    %v417 = vpop.f32.mrf.mxu0
    %v418 = vadd.f32 0.0, %v417
    %419 = vdwg.mxu0
    %v421 = vsel %vm97, %v79, 0
    %423 = vmatpush.msra.mxu0 0.0
    %424 = vmatpush.msra.mxu0 0.0
    %425 = vmatpush.msra.mxu0 0.0
    %426 = vmatpush.msra.mxu0 0.0
    %427 = vmatpush.msra.mxu0 0.0
    %428 = vmatpush.msra.mxu0 0.0
    %429 = vmatpush.msra.mxu0 0.0
    %430 = vmatpush.msra.mxu0 0.0
    %431 = vmatpush.msra.mxu0 0.0
    %432 = vmatpush.msra.mxu0 0.0
    %433 = vmatpush.msra.mxu0 0.0
    %434 = vmatpush.msra.mxu0 0.0
    %435 = vmatpush.msra.mxu0 0.0
    %436 = vmatpush.msra.mxu0 0.0
    %437 = vmatpush.msra.mxu0 0.0
    %438 = vmatpush.msra.mxu0 %v95
    %439 = vmatmul.f32.gmra.mxu0 %v421
    %v440 = vpop.f32.mrf.mxu0
    %v441 = vadd.f32 0.0, %v440
    %442 = vdwg.mxu0
    %v444 = vsel %vm97, %v80, 0
    %446 = vmatpush.msra.mxu0 0.0
    %447 = vmatpush.msra.mxu0 0.0
    %448 = vmatpush.msra.mxu0 0.0
    %449 = vmatpush.msra.mxu0 0.0
    %450 = vmatpush.msra.mxu0 0.0
    %451 = vmatpush.msra.mxu0 0.0
    %452 = vmatpush.msra.mxu0 0.0
    %453 = vmatpush.msra.mxu0 0.0
    %454 = vmatpush.msra.mxu0 0.0
    %455 = vmatpush.msra.mxu0 0.0
    %456 = vmatpush.msra.mxu0 0.0
    %457 = vmatpush.msra.mxu0 0.0
    %458 = vmatpush.msra.mxu0 0.0
    %459 = vmatpush.msra.mxu0 0.0
    %460 = vmatpush.msra.mxu0 0.0
    %461 = vmatpush.msra.mxu0 %v96
    %462 = vmatmul.f32.gmra.mxu0 %v444
    %v463 = vpop.f32.mrf.mxu0
    %v464 = vadd.f32 0.0, %v463
    %465 = vdwg.mxu0
    %v466 = vadd.f32 %v49, %v119
    %v467 = vadd.f32 %v50, %v142
    %v468 = vadd.f32 %v51, %v165
    %v469 = vadd.f32 %v52, %v188
    %v470 = vadd.f32 %v53, %v211
    %v471 = vadd.f32 %v54, %v234
    %v472 = vadd.f32 %v55, %v257
    %v473 = vadd.f32 %v56, %v280
    %v474 = vadd.f32 %v57, %v303
    %v475 = vadd.f32 %v58, %v326
    %v476 = vadd.f32 %v59, %v349
    %v477 = vadd.f32 %v60, %v372
    %v478 = vadd.f32 %v61, %v395
    %v479 = vadd.f32 %v62, %v418
    %v480 = vadd.f32 %v63, %v441
    %v481 = vadd.f32 %v64, %v464
    %vm482 = vcmask 253952
    %483 = vst.msk [vmem:[#allocation2] sm:$0x1] %vm482, %v466
    %484 = vst.msk [vmem:[#allocation2 + $0x1] sm:$0x1] %vm482, %v467
    %485 = vst.msk [vmem:[#allocation2 + $0x2] sm:$0x1] %vm482, %v468
    %486 = vst.msk [vmem:[#allocation2 + $0x3] sm:$0x1] %vm482, %v469
    %487 = vst.msk [vmem:[#allocation2 + $0x4] sm:$0x1] %vm482, %v470
    %488 = vst.msk [vmem:[#allocation2 + $0x5] sm:$0x1] %vm482, %v471
    %489 = vst.msk [vmem:[#allocation2 + $0x6] sm:$0x1] %vm482, %v472
    %490 = vst.msk [vmem:[#allocation2 + $0x7] sm:$0x1] %vm482, %v473
    %491 = vst.msk [vmem:[#allocation2 + $0x8] sm:$0x1] %vm482, %v474
    %492 = vst.msk [vmem:[#allocation2 + $0x9] sm:$0x1] %vm482, %v475
    %493 = vst.msk [vmem:[#allocation2 + $0xa] sm:$0x1] %vm482, %v476
    %494 = vst.msk [vmem:[#allocation2 + $0xb] sm:$0x1] %vm482, %v477
    %495 = vst.msk [vmem:[#allocation2 + $0xc] sm:$0x1] %vm482, %v478
    %496 = vst.msk [vmem:[#allocation2 + $0xd] sm:$0x1] %vm482, %v479
    %497 = vst.msk [vmem:[#allocation2 + $0xe] sm:$0x1] %vm482, %v480
    %498 = vst.msk [vmem:[#allocation2 + $0xf] sm:$0x1] %vm482, %v481
    // Predicated region
    $region18: #{tpu_custom_call.1} parent=1 // pred_check
      %p499 = pneg %p28
    $region19: #{tpu_custom_call.1} parent=1 // pred_check_branch
      %501 = sbr.rel (%p499) target = $region21
    $region20: #{tpu_custom_call.1} parent=1 // pred_region
      %v502 = vld [vmem:[#allocation2] sm:$0x1]
      %v503 = vld [vmem:[#allocation2 + $0x1] sm:$0x1]
      %v504 = vld [vmem:[#allocation2 + $0x2] sm:$0x1]
      %v505 = vld [vmem:[#allocation2 + $0x3] sm:$0x1]
      %v506 = vld [vmem:[#allocation2 + $0x4] sm:$0x1]
      %v507 = vld [vmem:[#allocation2 + $0x5] sm:$0x1]
      %v508 = vld [vmem:[#allocation2 + $0x6] sm:$0x1]
      %v509 = vld [vmem:[#allocation2 + $0x7] sm:$0x1]
      %v510 = vld [vmem:[#allocation2 + $0x8] sm:$0x1]
      %v511 = vld [vmem:[#allocation2 + $0x9] sm:$0x1]
      %v512 = vld [vmem:[#allocation2 + $0xa] sm:$0x1]
      %v513 = vld [vmem:[#allocation2 + $0xb] sm:$0x1]
      %v514 = vld [vmem:[#allocation2 + $0xc] sm:$0x1]
      %v515 = vld [vmem:[#allocation2 + $0xd] sm:$0x1]
      %v516 = vld [vmem:[#allocation2 + $0xe] sm:$0x1]
      %v517 = vld [vmem:[#allocation2 + $0xf] sm:$0x1]
      %v518 = vmul.f32 %v502, %v502
      %v519 = vmul.f32 %v503, %v503
      %v520 = vmul.f32 %v504, %v504
      %v521 = vmul.f32 %v505, %v505
      %v522 = vmul.f32 %v506, %v506
      %v523 = vmul.f32 %v507, %v507
      %v524 = vmul.f32 %v508, %v508
      %v525 = vmul.f32 %v509, %v509
      %v526 = vmul.f32 %v510, %v510
      %v527 = vmul.f32 %v511, %v511
      %v528 = vmul.f32 %v512, %v512
      %v529 = vmul.f32 %v513, %v513
      %v530 = vmul.f32 %v514, %v514
      %v531 = vmul.f32 %v515, %v515
      %v532 = vmul.f32 %v516, %v516
      %v533 = vmul.f32 %v517, %v517
      %v534 = vsel %vm482, %v518, 0.0
      %535 = vadd.xlane.f32.xlu0 %v534
      %v536 = vpop.xlane.xlu0 %535
      %v537 = vsel %vm482, %v519, 0.0
      %538 = vadd.xlane.f32.xlu0 %v537
      %v539 = vpop.xlane.xlu0 %538
      %v540 = vsel %vm482, %v520, 0.0
      %541 = vadd.xlane.f32.xlu0 %v540
      %v542 = vpop.xlane.xlu0 %541
      %v543 = vsel %vm482, %v521, 0.0
      %544 = vadd.xlane.f32.xlu0 %v543
      %v545 = vpop.xlane.xlu0 %544
      %v546 = vsel %vm482, %v522, 0.0
      %547 = vadd.xlane.f32.xlu0 %v546
      %v548 = vpop.xlane.xlu0 %547
      %v549 = vsel %vm482, %v523, 0.0
      %550 = vadd.xlane.f32.xlu0 %v549
      %v551 = vpop.xlane.xlu0 %550
      %v552 = vsel %vm482, %v524, 0.0
      %553 = vadd.xlane.f32.xlu0 %v552
      %v554 = vpop.xlane.xlu0 %553
      %v555 = vsel %vm482, %v525, 0.0
      %556 = vadd.xlane.f32.xlu0 %v555
      %v557 = vpop.xlane.xlu0 %556
      %v558 = vsel %vm482, %v526, 0.0
      %559 = vadd.xlane.f32.xlu0 %v558
      %v560 = vpop.xlane.xlu0 %559
      %v561 = vsel %vm482, %v527, 0.0
      %562 = vadd.xlane.f32.xlu0 %v561
      %v563 = vpop.xlane.xlu0 %562
      %v564 = vsel %vm482, %v528, 0.0
      %565 = vadd.xlane.f32.xlu0 %v564
      %v566 = vpop.xlane.xlu0 %565
      %v567 = vsel %vm482, %v529, 0.0
      %568 = vadd.xlane.f32.xlu0 %v567
      %v569 = vpop.xlane.xlu0 %568
      %v570 = vsel %vm482, %v530, 0.0
      %571 = vadd.xlane.f32.xlu0 %v570
      %v572 = vpop.xlane.xlu0 %571
      %v573 = vsel %vm482, %v531, 0.0
      %574 = vadd.xlane.f32.xlu0 %v573
      %v575 = vpop.xlane.xlu0 %574
      %v576 = vsel %vm482, %v532, 0.0
      %577 = vadd.xlane.f32.xlu0 %v576
      %v578 = vpop.xlane.xlu0 %577
      %v579 = vsel %vm482, %v533, 0.0
      %580 = vadd.xlane.f32.xlu0 %v579
      %v581 = vpop.xlane.xlu0 %580
      %v582 = vmax.f32 %v536, 1e-24
      %v583 = vmax.f32 %v539, 1e-24
      %v584 = vmax.f32 %v542, 1e-24
      %v585 = vmax.f32 %v545, 1e-24
      %v586 = vmax.f32 %v548, 1e-24
      %v587 = vmax.f32 %v551, 1e-24
      %v588 = vmax.f32 %v554, 1e-24
      %v589 = vmax.f32 %v557, 1e-24
      %v590 = vmax.f32 %v560, 1e-24
      %v591 = vmax.f32 %v563, 1e-24
      %v592 = vmax.f32 %v566, 1e-24
      %v593 = vmax.f32 %v569, 1e-24
      %v594 = vmax.f32 %v572, 1e-24
      %v595 = vmax.f32 %v575, 1e-24
      %v596 = vmax.f32 %v578, 1e-24
      %v597 = vmax.f32 %v581, 1e-24
      %v598 = vrsqrt.pop %v582
      %v599 = vmul.f32 %v598, %v582
      %v600 = vmul.f32 %v599, %v598
      %v601 = vmul.f32 0.5, %v600
      %v602 = vsub.f32 1.5, %v601
      %v603 = vmul.f32 %v598, %v602
      %vm604 = vweird.f32 %v582
      %vm605 = vweird.f32 %v598
      %vm606 = vmor %vm604, %vm605
      %v607 = vsel %vm606, %v598, %v603
      %v608 = vrsqrt.pop %v583
      %v609 = vmul.f32 %v608, %v583
      %v610 = vmul.f32 %v609, %v608
      %v611 = vmul.f32 0.5, %v610
      %v612 = vsub.f32 1.5, %v611
      %v613 = vmul.f32 %v608, %v612
      %vm614 = vweird.f32 %v583
      %vm615 = vweird.f32 %v608
      %vm616 = vmor %vm614, %vm615
      %v617 = vsel %vm616, %v608, %v613
      %v618 = vrsqrt.pop %v584
      %v619 = vmul.f32 %v618, %v584
      %v620 = vmul.f32 %v619, %v618
      %v621 = vmul.f32 0.5, %v620
      %v622 = vsub.f32 1.5, %v621
      %v623 = vmul.f32 %v618, %v622
      %vm624 = vweird.f32 %v584
      %vm625 = vweird.f32 %v618
      %vm626 = vmor %vm624, %vm625
      %v627 = vsel %vm626, %v618, %v623
      %v628 = vrsqrt.pop %v585
      %v629 = vmul.f32 %v628, %v585
      %v630 = vmul.f32 %v629, %v628
      %v631 = vmul.f32 0.5, %v630
      %v632 = vsub.f32 1.5, %v631
      %v633 = vmul.f32 %v628, %v632
      %vm634 = vweird.f32 %v585
      %vm635 = vweird.f32 %v628
      %vm636 = vmor %vm634, %vm635
      %v637 = vsel %vm636, %v628, %v633
      %v638 = vrsqrt.pop %v586
      %v639 = vmul.f32 %v638, %v586
      %v640 = vmul.f32 %v639, %v638
      %v641 = vmul.f32 0.5, %v640
      %v642 = vsub.f32 1.5, %v641
      %v643 = vmul.f32 %v638, %v642
      %vm644 = vweird.f32 %v586
      %vm645 = vweird.f32 %v638
      %vm646 = vmor %vm644, %vm645
      %v647 = vsel %vm646, %v638, %v643
      %v648 = vrsqrt.pop %v587
      %v649 = vmul.f32 %v648, %v587
      %v650 = vmul.f32 %v649, %v648
      %v651 = vmul.f32 0.5, %v650
      %v652 = vsub.f32 1.5, %v651
      %v653 = vmul.f32 %v648, %v652
      %vm654 = vweird.f32 %v587
      %vm655 = vweird.f32 %v648
      %vm656 = vmor %vm654, %vm655
      %v657 = vsel %vm656, %v648, %v653
      %v658 = vrsqrt.pop %v588
      %v659 = vmul.f32 %v658, %v588
      %v660 = vmul.f32 %v659, %v658
      %v661 = vmul.f32 0.5, %v660
      %v662 = vsub.f32 1.5, %v661
      %v663 = vmul.f32 %v658, %v662
      %vm664 = vweird.f32 %v588
      %vm665 = vweird.f32 %v658
      %vm666 = vmor %vm664, %vm665
      %v667 = vsel %vm666, %v658, %v663
      %v668 = vrsqrt.pop %v589
      %v669 = vmul.f32 %v668, %v589
      %v670 = vmul.f32 %v669, %v668
      %v671 = vmul.f32 0.5, %v670
      %v672 = vsub.f32 1.5, %v671
      %v673 = vmul.f32 %v668, %v672
      %vm674 = vweird.f32 %v589
      %vm675 = vweird.f32 %v668
      %vm676 = vmor %vm674, %vm675
      %v677 = vsel %vm676, %v668, %v673
      %v678 = vrsqrt.pop %v590
      %v679 = vmul.f32 %v678, %v590
      %v680 = vmul.f32 %v679, %v678
      %v681 = vmul.f32 0.5, %v680
      %v682 = vsub.f32 1.5, %v681
      %v683 = vmul.f32 %v678, %v682
      %vm684 = vweird.f32 %v590
      %vm685 = vweird.f32 %v678
      %vm686 = vmor %vm684, %vm685
      %v687 = vsel %vm686, %v678, %v683
      %v688 = vrsqrt.pop %v591
      %v689 = vmul.f32 %v688, %v591
      %v690 = vmul.f32 %v689, %v688
      %v691 = vmul.f32 0.5, %v690
      %v692 = vsub.f32 1.5, %v691
      %v693 = vmul.f32 %v688, %v692
      %vm694 = vweird.f32 %v591
      %vm695 = vweird.f32 %v688
      %vm696 = vmor %vm694, %vm695
      %v697 = vsel %vm696, %v688, %v693
      %v698 = vrsqrt.pop %v592
      %v699 = vmul.f32 %v698, %v592
      %v700 = vmul.f32 %v699, %v698
      %v701 = vmul.f32 0.5, %v700
      %v702 = vsub.f32 1.5, %v701
      %v703 = vmul.f32 %v698, %v702
      %vm704 = vweird.f32 %v592
      %vm705 = vweird.f32 %v698
      %vm706 = vmor %vm704, %vm705
      %v707 = vsel %vm706, %v698, %v703
      %v708 = vrsqrt.pop %v593
      %v709 = vmul.f32 %v708, %v593
      %v710 = vmul.f32 %v709, %v708
      %v711 = vmul.f32 0.5, %v710
      %v712 = vsub.f32 1.5, %v711
      %v713 = vmul.f32 %v708, %v712
      %vm714 = vweird.f32 %v593
      %vm715 = vweird.f32 %v708
      %vm716 = vmor %vm714, %vm715
      %v717 = vsel %vm716, %v708, %v713
      %v718 = vrsqrt.pop %v594
      %v719 = vmul.f32 %v718, %v594
      %v720 = vmul.f32 %v719, %v718
      %v721 = vmul.f32 0.5, %v720
      %v722 = vsub.f32 1.5, %v721
      %v723 = vmul.f32 %v718, %v722
      %vm724 = vweird.f32 %v594
      %vm725 = vweird.f32 %v718
      %vm726 = vmor %vm724, %vm725
      %v727 = vsel %vm726, %v718, %v723
      %v728 = vrsqrt.pop %v595
      %v729 = vmul.f32 %v728, %v595
      %v730 = vmul.f32 %v729, %v728
      %v731 = vmul.f32 0.5, %v730
      %v732 = vsub.f32 1.5, %v731
      %v733 = vmul.f32 %v728, %v732
      %vm734 = vweird.f32 %v595
      %vm735 = vweird.f32 %v728
      %vm736 = vmor %vm734, %vm735
      %v737 = vsel %vm736, %v728, %v733
      %v738 = vrsqrt.pop %v596
      %v739 = vmul.f32 %v738, %v596
      %v740 = vmul.f32 %v739, %v738
      %v741 = vmul.f32 0.5, %v740
      %v742 = vsub.f32 1.5, %v741
      %v743 = vmul.f32 %v738, %v742
      %vm744 = vweird.f32 %v596
      %vm745 = vweird.f32 %v738
      %vm746 = vmor %vm744, %vm745
      %v747 = vsel %vm746, %v738, %v743
      %v748 = vrsqrt.pop %v597
      %v749 = vmul.f32 %v748, %v597
      %v750 = vmul.f32 %v749, %v748
      %v751 = vmul.f32 0.5, %v750
      %v752 = vsub.f32 1.5, %v751
      %v753 = vmul.f32 %v748, %v752
      %vm754 = vweird.f32 %v597
      %vm755 = vweird.f32 %v748
      %vm756 = vmor %vm754, %vm755
      %v757 = vsel %vm756, %v748, %v753
      %v758 = vmul.f32 %v502, %v607
      %v759 = vmul.f32 %v503, %v617
      %v760 = vmul.f32 %v504, %v627
      %v761 = vmul.f32 %v505, %v637
      %v762 = vmul.f32 %v506, %v647
      %v763 = vmul.f32 %v507, %v657
      %v764 = vmul.f32 %v508, %v667
      %v765 = vmul.f32 %v509, %v677
      %v766 = vmul.f32 %v510, %v687
      %v767 = vmul.f32 %v511, %v697
      %v768 = vmul.f32 %v512, %v707
      %v769 = vmul.f32 %v513, %v717
      %v770 = vmul.f32 %v514, %v727
      %v771 = vmul.f32 %v515, %v737
      %v772 = vmul.f32 %v516, %v747
      %v773 = vmul.f32 %v517, %v757
      %790 = vst [vmem:[#allocation1] ss:$9 sm:$0xff] %v758
      %s791 = scalar_lea.vmem [#allocation1], 1
      %792 = vst [vmem:[%s791] ss:$9 sm:$0xff] %v759
      %s793 = scalar_lea.vmem [#allocation1], 2
      %794 = vst [vmem:[%s793] ss:$9 sm:$0xff] %v760
      %s795 = scalar_lea.vmem [#allocation1], 3
      %796 = vst [vmem:[%s795] ss:$9 sm:$0xff] %v761
      %s797 = scalar_lea.vmem [#allocation1], 4
      %798 = vst [vmem:[%s797] ss:$9 sm:$0xff] %v762
      %s799 = scalar_lea.vmem [#allocation1], 5
      %800 = vst [vmem:[%s799] ss:$9 sm:$0xff] %v763
      %s801 = scalar_lea.vmem [#allocation1], 6
      %802 = vst [vmem:[%s801] ss:$9 sm:$0xff] %v764
      %s803 = scalar_lea.vmem [#allocation1], 7
      %804 = vst [vmem:[%s803] ss:$9 sm:$0xff] %v765
      %v805 = vld [vmem:[#allocation1] sm:$0xff]
      %806 = vst [vmem:[#allocation1] ss:$9 sm:$0xff] %v766
      %807 = vst [vmem:[%s791] ss:$9 sm:$0xff] %v767
      %808 = vst [vmem:[%s793] ss:$9 sm:$0xff] %v768
      %809 = vst [vmem:[%s795] ss:$9 sm:$0xff] %v769
      %810 = vst [vmem:[%s797] ss:$9 sm:$0xff] %v770
      %811 = vst [vmem:[%s799] ss:$9 sm:$0xff] %v771
      %812 = vst [vmem:[%s801] ss:$9 sm:$0xff] %v772
      %813 = vst [vmem:[%s803] ss:$9 sm:$0xff] %v773
      %v814 = vld [vmem:[#allocation1] sm:$0xff]
      %vm817 = vcmask 261120
      %818 = vst.msk [vmem:[#allocation6] sm:$0xff] %vm817, %v805
      %819 = vst.msk [vmem:[#allocation6 + $0x8] sm:$0xff] %vm817, %v814
    $region21: #{tpu_custom_call.1} parent=1 // pred_fallthru
      _
    // Predicated region
    $region22: #{tpu_custom_call.1} parent=1 // pred_check
      _
    $region23: #{tpu_custom_call.1} parent=1 // pred_check_branch
      %821 = sbr.rel (0) target = $region25
    $region24: #{tpu_custom_call.1} parent=1 // pred_region
      %823 = vsyncadd [#allocation5], 0
      %s824 = sshll.u32 [#allocation6], 4
      %s825 = int_to_ptr.vmem [resolvable:$true] %s824
      %s826 = sshll.u32 %s2, 4
      %s827 = int_to_ptr.hbm [resolvable:$true] %s826
      %832 = dma.vmem_to_hbm [thread:$0]  %s825, 256, %s827, [#allocation5], 128, 128, 8
    $region25: #{tpu_custom_call.1} parent=1 // pred_fallthru
      _
    // Predicated region
    $region26: #{tpu_custom_call.1} parent=1 // pred_check
      _
    $region27: #{tpu_custom_call.1} parent=1 // pred_check_branch
      %834 = sbr.rel (0) target = $region29
    $region28: #{tpu_custom_call.1} parent=1 // pred_region
      %836 = dma.done [#allocation5], 256
    $region29: #{tpu_custom_call.1} parent=1 // pred_fallthru
      _
    %837 = vsyncpa [#allocation4], 1
    %838 = vsyncpa [#allocation5], 1

</llo_original>
